<compile_context>
chip_gen: v6e
topology: v6e:2x2x1
jax: 0.10.0
libtpu: 0.0.40
codegen_flags: <defaults>
</compile_context>

<pallas_src>
import math

import jax
import jax.numpy as jnp
from jax.experimental import pallas as pl
from jax.experimental.pallas import tpu as pltpu

_LANE = 128
_SUBLANE = 8

# Per-tensor f32 byte size under which a tensor takes the fused whole-tensor-in-VMEM path.
# Conservative so that 3 tensors (in f32 + out f32 = 24 MiB) fit v7x's 64 MiB VMEM.
_SMALL_LIMIT_BYTES = 4 * 1024 * 1024
# Scoped-VMEM limit handed to Mosaic: safe on v5e/v6e (128 MiB physical) and v7x (64 MiB).
_VMEM_LIMIT_BYTES = 48 * 1024 * 1024
# Large-path block target: ~4 MiB f32 per block (in+out double-buffered ~= 16 MiB).
_LARGE_BLOCK_BYTES = 4 * 1024 * 1024


# ---------------------------------------------------------------------------
# layout helpers (metadata-only reshapes; no HBM copies when sizes divide evenly)
# ---------------------------------------------------------------------------
def _lane_view(x):
    """Lane-dense 2-D view of x (free reshape when size divides 128)."""
    n = math.prod(x.shape)
    if n % _LANE == 0:
        return x.reshape(n // _LANE, _LANE)
    return x.reshape(1, n)          # full-array block; masked tail lanes, still correct


def _choose_lane_width(n):
    for w in (1024, 512, 256, 128):
        if n % w == 0:
            return w
    return _LANE                    # ragged: will be edge-padded to a lane multiple


# ---------------------------------------------------------------------------
# Small-tensor path: ONE pallas_call, grid=(), all tensors VMEM-resident.
# Each tensor is normalized independently inside the body (no pre-kernel stack/pad).
# ---------------------------------------------------------------------------
def _make_fused_kernel(n_tensors):
    def kernel(*refs):
        in_refs = refs[:n_tensors]
        out_refs = refs[n_tensors:]
        for x_ref, o_ref in zip(in_refs, out_refs):
            xv = x_ref[...].astype(jnp.float32)
            mn = jnp.min(xv)
            mx = jnp.max(xv)
            scale = 1.0 / (mx - mn + 1e-6)        # one scalar reciprocal
            o_ref[...] = (xv - mn) * scale        # elementwise multiply, no vector divide
    return kernel


def _normalize_small_many(tensors):
    views = [_lane_view(t) for t in tensors]
    n = len(views)
    outs = pl.pallas_call(
        _make_fused_kernel(n),
        out_shape=tuple(jax.ShapeDtypeStruct(v.shape, jnp.float32) for v in views),
        in_specs=tuple(pl.BlockSpec(memory_space=pltpu.MemorySpace.VMEM)
                       for _ in views),
        out_specs=tuple(pl.BlockSpec(memory_space=pltpu.MemorySpace.VMEM)
                        for _ in views),
        compiler_params=pltpu.CompilerParams(vmem_limit_bytes=_VMEM_LIMIT_BYTES),
    )(*views)
    if not isinstance(outs, (tuple, list)):
        outs = (outs,)
    return [o.reshape(t.shape) for o, t in zip(outs, tensors)]


# ---------------------------------------------------------------------------
# Large-tensor path:
#   pass 1 (parallel): per-block (8, lane) partial min / max  (VPU sublane-direction
#                      reduce only; tiny partials folded in plain JAX)
#   pass 2 (parallel): elementwise normalize using (min, 1/range) from SMEM
# ---------------------------------------------------------------------------
def _partial_minmax_kernel(x_ref, pmin_ref, pmax_ref):
    xv = x_ref[...].astype(jnp.float32)
    mn_row = jnp.min(xv, axis=0, keepdims=True)       # (1, lane)
    mx_row = jnp.max(xv, axis=0, keepdims=True)
    pmin_ref[...] = jnp.broadcast_to(mn_row[None], pmin_ref.shape)
    pmax_ref[...] = jnp.broadcast_to(mx_row[None], pmax_ref.shape)


def _apply_norm_kernel(stat_ref, x_ref, o_ref):
    mn = stat_ref[0]
    scale = stat_ref[1]
    o_ref[...] = (x_ref[...].astype(jnp.float32) - mn) * scale


def _normalize_large(x):
    n = math.prod(x.shape)
    lane = _choose_lane_width(n)

    flat = x.reshape(-1)
    pad_lane = (-n) % lane
    if pad_lane:
        flat = jnp.pad(flat, (0, pad_lane), mode="edge")   # edge vals never change min/max
    rows = flat.shape[0] // lane
    x2 = flat.reshape(rows, lane)

    # ~4 MiB blocks; block_rows chosen as a sublane-multiple divisor-ish of rows to
    # minimize edge-padding waste.
    target_rows = max(_SUBLANE, _LARGE_BLOCK_BYTES // (4 * lane))
    n_blocks = max(1, -(-rows // target_rows))            # cdiv
    block_rows = -(-rows // n_blocks)
    block_rows = ((block_rows + _SUBLANE - 1) // _SUBLANE) * _SUBLANE
    padded_rows = block_rows * n_blocks
    if padded_rows != rows:
        x2 = jnp.pad(x2, ((0, padded_rows - rows), (0, 0)), mode="edge")

    # pass 1: per-block partial min / max (megacore-parallel on v7x)
    pmin, pmax = pl.pallas_call(
        _partial_minmax_kernel,
        out_shape=(jax.ShapeDtypeStruct((n_blocks, _SUBLANE, lane), jnp.float32),
                   jax.ShapeDtypeStruct((n_blocks, _SUBLANE, lane), jnp.float32)),
        grid_spec=pltpu.PrefetchScalarGridSpec(
            num_scalar_prefetch=0,
            grid=(n_blocks,),
            in_specs=[pl.BlockSpec((block_rows, lane), lambda i: (i, 0))],
            out_specs=(pl.BlockSpec((1, _SUBLANE, lane), lambda i: (i, 0, 0)),
                       pl.BlockSpec((1, _SUBLANE, lane), lambda i: (i, 0, 0)))),
        compiler_params=pltpu.CompilerParams(
            dimension_semantics=("parallel",),
            vmem_limit_bytes=_VMEM_LIMIT_BYTES),
    )(x2)

    # fold the tiny partials in plain JAX
    mn = jnp.min(pmin)
    mx = jnp.max(pmax)
    scale = 1.0 / (mx - mn + jnp.float32(1e-6))
    stats = jnp.stack([mn, scale]).astype(jnp.float32)    # (2,) -> SMEM

    out2 = pl.pallas_call(
        _apply_norm_kernel,
        out_shape=jax.ShapeDtypeStruct((padded_rows, lane), jnp.float32),
        grid_spec=pltpu.PrefetchScalarGridSpec(
            num_scalar_prefetch=0,
            grid=(n_blocks,),
            in_specs=[pl.BlockSpec(memory_space=pltpu.MemorySpace.SMEM),
                      pl.BlockSpec((block_rows, lane), lambda i: (i, 0))],
            out_specs=pl.BlockSpec((block_rows, lane), lambda i: (i, 0))),
        compiler_params=pltpu.CompilerParams(
            dimension_semantics=("parallel",),
            vmem_limit_bytes=_VMEM_LIMIT_BYTES),
    )(stats, x2)

    out_flat = out2.reshape(-1)
    if out_flat.shape[0] != n:
        out_flat = out_flat[:n]
    return out_flat.reshape(x.shape)


# ---------------------------------------------------------------------------
# public wrappers
# ---------------------------------------------------------------------------
def minmax_normalize(x, *, small_limit_bytes=_SMALL_LIMIT_BYTES):
    """Global min-max normalization -> float32, same shape as x."""
    n = math.prod(x.shape)
    if n * 4 <= small_limit_bytes:
        return _normalize_small_many([x])[0]
    return _normalize_large(x)


def minmax_normalize_many(tensors, *, small_limit_bytes=_SMALL_LIMIT_BYTES):
    """Normalize each tensor independently; fuses all into ONE pallas_call when they fit VMEM."""
    if all(math.prod(t.shape) * 4 <= small_limit_bytes for t in tensors):
        return _normalize_small_many(list(tensors))
    return [minmax_normalize(t, small_limit_bytes=small_limit_bytes) for t in tensors]


# ---------------------------------------------------------------------------
# torchvision.utils.make_grid(x, nrow=1, padding=2, pad_value=1) — layout glue
# (single pad + reshape + pad instead of per-image dynamic-update-slices)
# ---------------------------------------------------------------------------
def make_grid_nrow1(x, padding=2, pad_value=1.0):
    B, C, H, W = x.shape
    if C == 1:                                   # make_grid replicates single-channel to 3
        x = jnp.tile(x, (1, 3, 1, 1))
        C = 3
    # pad the top & left of every image with pad_value
    xp = jnp.pad(x, ((0, 0), (0, 0), (padding, 0), (padding, 0)),
                 constant_values=pad_value)
    # stack images vertically (nrow=1): (C, B*(H+padding), W+padding)
    col = jnp.transpose(xp, (1, 0, 2, 3)).reshape(C, B * (H + padding), W + padding)
    # closing pad on bottom & right
    return jnp.pad(col, ((0, 0), (0, padding), (0, padding)),
                   constant_values=pad_value)


# ---------------------------------------------------------------------------
# Visualize_train.forward equivalent
# ---------------------------------------------------------------------------
def visualize_train_forward(img_list, gaze_list, gaze_pred_list, epoch=0, writer=None):
    tags = ("img", "gaze", "gaze_pred")
    normed = minmax_normalize_many([img_list, gaze_list, gaze_pred_list])
    grids = {}
    for tag, nt in zip(tags, normed):
        grids[tag] = make_grid_nrow1(nt, padding=2, pad_value=1.0)
        # TODO(synk): writer.add_image(tag, grid, epoch) is TensorBoard I/O — no Pallas equivalent.
    return grids


if __name__ == "__main__":
    key = jax.random.PRNGKey(0)
    k1, k2, k3, k4 = jax.random.split(key, 4)
    # SIIM-ACR style: batch of grayscale chest X-rays + gaze heatmaps (NCHW).
    img_list = jax.random.normal(k1, (2, 1, 16, 16), dtype=jnp.float32) * 3.0 + 1.0
    gaze_list = jax.random.uniform(k2, (2, 1, 16, 16), dtype=jnp.float32)
    gaze_pred_list = jax.random.normal(k3, (2, 1, 16, 16), dtype=jnp.float32)

    grids = visualize_train_forward(img_list, gaze_list, gaze_pred_list, epoch=0, writer=None)
    jax.block_until_ready(grids)

    def ref_norm(t):
        t = t.astype(jnp.float32)
        return (t - t.min()) / (t.max() - t.min() + 1e-6)

    # fused small-tensor (single launch, three separate refs) correctness
    normed = minmax_normalize_many([img_list, gaze_list, gaze_pred_list])
    for got, src in zip(normed, (img_list, gaze_list, gaze_pred_list)):
        assert jnp.allclose(got, ref_norm(src), atol=1e-5), "fused normalization mismatch"

    # large-tensor (parallel partial-minmax reduce + parallel normalize) path correctness
    big = jax.random.normal(k4, (4, 1, 64, 128), dtype=jnp.float32) * 5.0 - 2.0
    got_big = minmax_normalize(big, small_limit_bytes=0)
    assert jnp.allclose(got_big, ref_norm(big), atol=1e-5), "large-path normalization mismatch"

    # make_grid layout check (nrow=1, padding=2, pad_value=1)
    assert grids["img"].shape == (3, 2 * (16 + 2) + 2, 16 + 4)
    assert jnp.all(grids["img"][:, :2, :] == 1.0)   # top border is pad_value

    print("KERNEL_OK")
</pallas_src>

<mosaic_0001>
module attributes {stable_mosaic.version = 11 : i64} {
  func.func @kernel(%arg0: memref<4x128xf32, #tpu.memory_space<vmem>>, %arg1: memref<4x128xf32, #tpu.memory_space<vmem>>, %arg2: memref<4x128xf32, #tpu.memory_space<vmem>>, %arg3: memref<4x128xf32, #tpu.memory_space<vmem>>, %arg4: memref<4x128xf32, #tpu.memory_space<vmem>>, %arg5: memref<4x128xf32, #tpu.memory_space<vmem>>) attributes {dimension_semantics = [], scalar_prefetch = 0 : i64, scratch_operands = 0 : i64, tpu.core_type = #tpu.core_type<tc>} {
    %c0 = arith.constant 0 : index
    %c0_0 = arith.constant 0 : index
    %0 = vector.load %arg0[%c0, %c0_0] : memref<4x128xf32, #tpu.memory_space<vmem>>, vector<4x128xf32>
    %1 = vector.shape_cast %0 : vector<4x128xf32> to vector<1x4x128xf32>
    %cst = arith.constant dense<0x7F800000> : vector<1xf32>
    %2 = vector.multi_reduction <minimumf>, %1, %cst [1, 2] : vector<1x4x128xf32> to vector<1xf32>
    %3 = vector.shape_cast %2 : vector<1xf32> to vector<1x1x1xf32>
    %4 = vector.extract %3[0, 0, 0] : f32 from vector<1x1x1xf32>
    %5 = vector.shape_cast %0 : vector<4x128xf32> to vector<1x4x128xf32>
    %cst_1 = arith.constant dense<0xFF800000> : vector<1xf32>
    %6 = vector.multi_reduction <maximumf>, %5, %cst_1 [1, 2] : vector<1x4x128xf32> to vector<1xf32>
    %7 = vector.shape_cast %6 : vector<1xf32> to vector<1x1x1xf32>
    %8 = vector.extract %7[0, 0, 0] : f32 from vector<1x1x1xf32>
    %9 = arith.subf %8, %4 : f32
    %cst_2 = arith.constant 9.99999997E-7 : f32
    %10 = arith.addf %9, %cst_2 : f32
    %cst_3 = arith.constant 1.000000e+00 : f32
    %11 = arith.divf %cst_3, %10 : f32
    %12 = vector.broadcast %4 : f32 to vector<4x128xf32>
    %13 = arith.subf %0, %12 : vector<4x128xf32>
    %14 = vector.broadcast %11 : f32 to vector<4x128xf32>
    %15 = arith.mulf %13, %14 : vector<4x128xf32>
    %c0_4 = arith.constant 0 : index
    %c0_5 = arith.constant 0 : index
    %16 = vector.load %arg3[%c0_4, %c0_5] : memref<4x128xf32, #tpu.memory_space<vmem>>, vector<4x128xf32>
    tpu.vector_store %arg3[%c0_4, %c0_5], %15 {strides = array<i32>} : memref<4x128xf32, #tpu.memory_space<vmem>>, vector<4x128xf32>,
    %c0_6 = arith.constant 0 : index
    %c0_7 = arith.constant 0 : index
    %17 = vector.load %arg1[%c0_6, %c0_7] : memref<4x128xf32, #tpu.memory_space<vmem>>, vector<4x128xf32>
    %18 = vector.shape_cast %17 : vector<4x128xf32> to vector<1x4x128xf32>
    %cst_8 = arith.constant dense<0x7F800000> : vector<1xf32>
    %19 = vector.multi_reduction <minimumf>, %18, %cst_8 [1, 2] : vector<1x4x128xf32> to vector<1xf32>
    %20 = vector.shape_cast %19 : vector<1xf32> to vector<1x1x1xf32>
    %21 = vector.extract %20[0, 0, 0] : f32 from vector<1x1x1xf32>
    %22 = vector.shape_cast %17 : vector<4x128xf32> to vector<1x4x128xf32>
    %cst_9 = arith.constant dense<0xFF800000> : vector<1xf32>
    %23 = vector.multi_reduction <maximumf>, %22, %cst_9 [1, 2] : vector<1x4x128xf32> to vector<1xf32>
    %24 = vector.shape_cast %23 : vector<1xf32> to vector<1x1x1xf32>
    %25 = vector.extract %24[0, 0, 0] : f32 from vector<1x1x1xf32>
    %26 = arith.subf %25, %21 : f32
    %cst_10 = arith.constant 9.99999997E-7 : f32
    %27 = arith.addf %26, %cst_10 : f32
    %cst_11 = arith.constant 1.000000e+00 : f32
    %28 = arith.divf %cst_11, %27 : f32
    %29 = vector.broadcast %21 : f32 to vector<4x128xf32>
    %30 = arith.subf %17, %29 : vector<4x128xf32>
    %31 = vector.broadcast %28 : f32 to vector<4x128xf32>
    %32 = arith.mulf %30, %31 : vector<4x128xf32>
    %c0_12 = arith.constant 0 : index
    %c0_13 = arith.constant 0 : index
    %33 = vector.load %arg4[%c0_12, %c0_13] : memref<4x128xf32, #tpu.memory_space<vmem>>, vector<4x128xf32>
    tpu.vector_store %arg4[%c0_12, %c0_13], %32 {strides = array<i32>} : memref<4x128xf32, #tpu.memory_space<vmem>>, vector<4x128xf32>,
    %c0_14 = arith.constant 0 : index
    %c0_15 = arith.constant 0 : index
    %34 = vector.load %arg2[%c0_14, %c0_15] : memref<4x128xf32, #tpu.memory_space<vmem>>, vector<4x128xf32>
    %35 = vector.shape_cast %34 : vector<4x128xf32> to vector<1x4x128xf32>
    %cst_16 = arith.constant dense<0x7F800000> : vector<1xf32>
    %36 = vector.multi_reduction <minimumf>, %35, %cst_16 [1, 2] : vector<1x4x128xf32> to vector<1xf32>
    %37 = vector.shape_cast %36 : vector<1xf32> to vector<1x1x1xf32>
    %38 = vector.extract %37[0, 0, 0] : f32 from vector<1x1x1xf32>
    %39 = vector.shape_cast %34 : vector<4x128xf32> to vector<1x4x128xf32>
    %cst_17 = arith.constant dense<0xFF800000> : vector<1xf32>
    %40 = vector.multi_reduction <maximumf>, %39, %cst_17 [1, 2] : vector<1x4x128xf32> to vector<1xf32>
    %41 = vector.shape_cast %40 : vector<1xf32> to vector<1x1x1xf32>
    %42 = vector.extract %41[0, 0, 0] : f32 from vector<1x1x1xf32>
    %43 = arith.subf %42, %38 : f32
    %cst_18 = arith.constant 9.99999997E-7 : f32
    %44 = arith.addf %43, %cst_18 : f32
    %cst_19 = arith.constant 1.000000e+00 : f32
    %45 = arith.divf %cst_19, %44 : f32
    %46 = vector.broadcast %38 : f32 to vector<4x128xf32>
    %47 = arith.subf %34, %46 : vector<4x128xf32>
    %48 = vector.broadcast %45 : f32 to vector<4x128xf32>
    %49 = arith.mulf %47, %48 : vector<4x128xf32>
    %c0_20 = arith.constant 0 : index
    %c0_21 = arith.constant 0 : index
    %50 = vector.load %arg5[%c0_20, %c0_21] : memref<4x128xf32, #tpu.memory_space<vmem>>, vector<4x128xf32>
    tpu.vector_store %arg5[%c0_20, %c0_21], %49 {strides = array<i32>} : memref<4x128xf32, #tpu.memory_space<vmem>>, vector<4x128xf32>,
    return
  }
}

</mosaic_0001>

<llo_original>
// kernel: tpu_custom_call.1
$region0: #{tpu_custom_call.1}
  #allocation0 [shape = 'u32[]', space=smem, size = 0x4, offset = 0x4, fixed_abs, tag = 'smem constant byte address 0x4 - core index']
  #allocation1 [shape = 'u32[144,128]{1,0:T(1,128)}', space=vmem, size = 0x12000, scoped, tag = 'internal scratch']
  %s0 = inlined_call_operand.hbm [shape: f32[4,128], index: 0, kind: input, shape index: {}]
  %s1 = inlined_call_operand.hbm [shape: f32[4,128], index: 1, kind: input, shape index: {}]
  %s2 = inlined_call_operand.hbm [shape: f32[4,128], index: 2, kind: input, shape index: {}]
  %s3 = inlined_call_operand.hbm [shape: f32[4,128], index: 3, kind: output, shape index: {0}]
  %s4 = inlined_call_operand.hbm [shape: f32[4,128], index: 4, kind: output, shape index: {1}]
  %s5 = inlined_call_operand.hbm [shape: f32[4,128], index: 5, kind: output, shape index: {2}]
  %6 = xla_tuple %s3, %s4, %s5
  %s7 = sld [smem:[#allocation0]]
  $region50: #{tpu_custom_call.1} parent=0
    _
  %s9 = ssub.s32 1, %s7
  %s10 = scalar_select 0, %s9, %s7
  $region1: #{tpu_custom_call.1} parent=0
    #allocation2 [shape = 'u8[2048]{0}', space=vmem, size = 0x800, scoped, tag = 'input window, operand 0, single buffered']
    #allocation3 [shape = 's32[1]{0}', space=sflag, size = 0x4, scoped, tag = 'scoped memory for tpu_custom_call.1']
    #allocation4 [shape = 's32[1]{0}', space=sflag, size = 0x4, scoped, tag = 'scoped memory for tpu_custom_call.1']
    #allocation5 [shape = 'u8[2048]{0}', space=vmem, size = 0x800, scoped, tag = 'input window, operand 1, single buffered']
    #allocation6 [shape = 's32[1]{0}', space=sflag, size = 0x4, scoped, tag = 'scoped memory for tpu_custom_call.1']
    #allocation7 [shape = 'u8[2048]{0}', space=vmem, size = 0x800, scoped, tag = 'input window, operand 2, single buffered']
    #allocation8 [shape = 'u8[2048]{0}', space=vmem, size = 0x800, scoped, tag = 'output window, operand 0, single buffered']
    #allocation9 [shape = 'u8[2048]{0}', space=vmem, size = 0x800, scoped, tag = 'output window, operand 1, single buffered']
    #allocation10 [shape = 's32[1]{0}', space=sflag, size = 0x4, scoped, tag = 'scoped memory for tpu_custom_call.1']
    #allocation11 [shape = 'u8[2048]{0}', space=vmem, size = 0x800, scoped, tag = 'output window, operand 2, single buffered']
    %11 = vsyncpa [#allocation3], 0
    %12 = vsyncpa [#allocation6], 0
    %13 = vsyncpa [#allocation4], 0
    %14 = vsyncpa [#allocation10], 0
    // Predicated region
    $region2: #{tpu_custom_call.1} parent=1 // pred_check
      _
    $region3: #{tpu_custom_call.1} parent=1 // pred_check_branch
      %16 = sbr.rel (0) target = $region5
    $region4: #{tpu_custom_call.1} parent=1 // pred_region
      %s18 = ssub.s32 64, 64
      %19 = vsyncadd [#allocation3], %s18
      %s21 = sshll.u32 [#allocation2], 4
      %s22 = int_to_ptr.vmem [resolvable:$true] %s21
      %24 = dma.hbm_to_vmem [thread:$0]  %s0, 64, %s22, [#allocation3]
    $region5: #{tpu_custom_call.1} parent=1 // pred_fallthru
      _
    // Predicated region
    $region6: #{tpu_custom_call.1} parent=1 // pred_check
      _
    $region7: #{tpu_custom_call.1} parent=1 // pred_check_branch
      %26 = sbr.rel (0) target = $region9
    $region8: #{tpu_custom_call.1} parent=1 // pred_region
      %s28 = ssub.s32 64, 64
      %29 = vsyncadd [#allocation6], %s28
      %s31 = sshll.u32 [#allocation5], 4
      %s32 = int_to_ptr.vmem [resolvable:$true] %s31
      %34 = dma.hbm_to_vmem [thread:$0]  %s1, 64, %s32, [#allocation6]
    $region9: #{tpu_custom_call.1} parent=1 // pred_fallthru
      _
    // Predicated region
    $region10: #{tpu_custom_call.1} parent=1 // pred_check
      _
    $region11: #{tpu_custom_call.1} parent=1 // pred_check_branch
      %36 = sbr.rel (0) target = $region13
    $region12: #{tpu_custom_call.1} parent=1 // pred_region
      %s38 = ssub.s32 64, 64
      %39 = vsyncadd [#allocation6], %s38
      %s41 = sshll.u32 [#allocation7], 4
      %s42 = int_to_ptr.vmem [resolvable:$true] %s41
      %44 = dma.hbm_to_vmem [thread:$0]  %s2, 64, %s42, [#allocation6]
    $region13: #{tpu_custom_call.1} parent=1 // pred_fallthru
      _
    // Predicated region
    $region14: #{tpu_custom_call.1} parent=1 // pred_check
      _
    $region15: #{tpu_custom_call.1} parent=1 // pred_check_branch
      %46 = sbr.rel (0) target = $region17
    $region16: #{tpu_custom_call.1} parent=1 // pred_region
      %47 = dma.done [#allocation3], 64
    $region17: #{tpu_custom_call.1} parent=1 // pred_fallthru
      _
    // Predicated region
    $region18: #{tpu_custom_call.1} parent=1 // pred_check
      _
    $region19: #{tpu_custom_call.1} parent=1 // pred_check_branch
      %49 = sbr.rel (0) target = $region21
    $region20: #{tpu_custom_call.1} parent=1 // pred_region
      %50 = dma.done [#allocation6], 64
    $region21: #{tpu_custom_call.1} parent=1 // pred_fallthru
      _
    // Predicated region
    $region22: #{tpu_custom_call.1} parent=1 // pred_check
      _
    $region23: #{tpu_custom_call.1} parent=1 // pred_check_branch
      %52 = sbr.rel (0) target = $region25
    $region24: #{tpu_custom_call.1} parent=1 // pred_region
      %53 = dma.done [#allocation6], 64
    $region25: #{tpu_custom_call.1} parent=1 // pred_fallthru
      _
    %v54 = vld [vmem:[#allocation2] sm:$0xf]
    %vm55 = vcmask 1043456
    %v56 = vsel %vm55, %v54, inf
    %57 = vmin.xlane.f32.xlu0 %v56
    %v58 = vpop.xlane.xlu0 %57
    %v59 = vrot.slane %v58, 4
    %v60 = vmin.f32 %v58, %v59
    %v61 = vrot.slane %v60, 2
    %v62 = vmin.f32 %v60, %v61
    %v63 = vrot.slane %v62, 1
    %v64 = vmin.f32 %v62, %v63
    %s65 = vtos %v64
    %v66 = vsel %vm55, %v54, -inf
    %67 = vmax.xlane.f32.xlu0 %v66
    %v68 = vpop.xlane.xlu0 %67
    %v69 = vrot.slane %v68, 4
    %v70 = vmax.f32 %v68, %v69
    %v71 = vrot.slane %v70, 2
    %v72 = vmax.f32 %v70, %v71
    %v73 = vrot.slane %v72, 1
    %v74 = vmax.f32 %v72, %v73
    %s75 = vtos %v74
    %s76 = ssub.f32 %s75, %s65
    %s77 = sadd.f32 %s76, 1e-06
    %v78 = vstv %s77
    %v79 = vrcp.pop %v78
    %s80 = vtos %v79
    %v81 = vstv %s65
    %v82 = vsub.f32 %v54, %v81
    %v83 = vstv %s80
    %v84 = vmul.f32 %v82, %v83
    %85 = vst [vmem:[#allocation8] sm:$0xf] %v84
    %v86 = vld [vmem:[#allocation5] sm:$0xf]
    %v87 = vsel %vm55, %v86, inf
    %88 = vmin.xlane.f32.xlu0 %v87
    %v89 = vpop.xlane.xlu0 %88
    %v90 = vrot.slane %v89, 4
    %v91 = vmin.f32 %v89, %v90
    %v92 = vrot.slane %v91, 2
    %v93 = vmin.f32 %v91, %v92
    %v94 = vrot.slane %v93, 1
    %v95 = vmin.f32 %v93, %v94
    %s96 = vtos %v95
    %v97 = vsel %vm55, %v86, -inf
    %98 = vmax.xlane.f32.xlu0 %v97
    %v99 = vpop.xlane.xlu0 %98
    %v100 = vrot.slane %v99, 4
    %v101 = vmax.f32 %v99, %v100
    %v102 = vrot.slane %v101, 2
    %v103 = vmax.f32 %v101, %v102
    %v104 = vrot.slane %v103, 1
    %v105 = vmax.f32 %v103, %v104
    %s106 = vtos %v105
    %s107 = ssub.f32 %s106, %s96
    %s108 = sadd.f32 %s107, 1e-06
    %v109 = vstv %s108
    %v110 = vrcp.pop %v109
    %s111 = vtos %v110
    %v112 = vstv %s96
    %v113 = vsub.f32 %v86, %v112
    %v114 = vstv %s111
    %v115 = vmul.f32 %v113, %v114
    %116 = vst [vmem:[#allocation9] sm:$0xf] %v115
    %v117 = vld [vmem:[#allocation7] sm:$0xf]
    %v118 = vsel %vm55, %v117, inf
    %119 = vmin.xlane.f32.xlu0 %v118
    %v120 = vpop.xlane.xlu0 %119
    %v121 = vrot.slane %v120, 4
    %v122 = vmin.f32 %v120, %v121
    %v123 = vrot.slane %v122, 2
    %v124 = vmin.f32 %v122, %v123
    %v125 = vrot.slane %v124, 1
    %v126 = vmin.f32 %v124, %v125
    %s127 = vtos %v126
    %v128 = vsel %vm55, %v117, -inf
    %129 = vmax.xlane.f32.xlu0 %v128
    %v130 = vpop.xlane.xlu0 %129
    %v131 = vrot.slane %v130, 4
    %v132 = vmax.f32 %v130, %v131
    %v133 = vrot.slane %v132, 2
    %v134 = vmax.f32 %v132, %v133
    %v135 = vrot.slane %v134, 1
    %v136 = vmax.f32 %v134, %v135
    %s137 = vtos %v136
    %s138 = ssub.f32 %s137, %s127
    %s139 = sadd.f32 %s138, 1e-06
    %v140 = vstv %s139
    %v141 = vrcp.pop %v140
    %s142 = vtos %v141
    %v143 = vstv %s127
    %v144 = vsub.f32 %v117, %v143
    %v145 = vstv %s142
    %v146 = vmul.f32 %v144, %v145
    %147 = vst [vmem:[#allocation11] sm:$0xf] %v146
    // Predicated region
    $region26: #{tpu_custom_call.1} parent=1 // pred_check
      _
    $region27: #{tpu_custom_call.1} parent=1 // pred_check_branch
      %149 = sbr.rel (0) target = $region29
    $region28: #{tpu_custom_call.1} parent=1 // pred_region
      %s151 = ssub.s32 64, 64
      %152 = vsyncadd [#allocation4], %s151
      %s154 = sshll.u32 [#allocation8], 4
      %s155 = int_to_ptr.vmem [resolvable:$true] %s154
      %157 = dma.vmem_to_hbm [thread:$0]  %s155, 64, %s3, [#allocation4]
    $region29: #{tpu_custom_call.1} parent=1 // pred_fallthru
      _
    // Predicated region
    $region30: #{tpu_custom_call.1} parent=1 // pred_check
      _
    $region31: #{tpu_custom_call.1} parent=1 // pred_check_branch
      %159 = sbr.rel (0) target = $region33
    $region32: #{tpu_custom_call.1} parent=1 // pred_region
      %s161 = ssub.s32 64, 64
      %162 = vsyncadd [#allocation10], %s161
      %s164 = sshll.u32 [#allocation9], 4
      %s165 = int_to_ptr.vmem [resolvable:$true] %s164
      %167 = dma.vmem_to_hbm [thread:$0]  %s165, 64, %s4, [#allocation10]
    $region33: #{tpu_custom_call.1} parent=1 // pred_fallthru
      _
    // Predicated region
    $region34: #{tpu_custom_call.1} parent=1 // pred_check
      _
    $region35: #{tpu_custom_call.1} parent=1 // pred_check_branch
      %169 = sbr.rel (0) target = $region37
    $region36: #{tpu_custom_call.1} parent=1 // pred_region
      %s171 = ssub.s32 64, 64
      %172 = vsyncadd [#allocation10], %s171
      %s174 = sshll.u32 [#allocation11], 4
      %s175 = int_to_ptr.vmem [resolvable:$true] %s174
      %177 = dma.vmem_to_hbm [thread:$0]  %s175, 64, %s5, [#allocation10]
    $region37: #{tpu_custom_call.1} parent=1 // pred_fallthru
      _
    // Predicated region
    $region38: #{tpu_custom_call.1} parent=1 // pred_check
      _
    $region39: #{tpu_custom_call.1} parent=1 // pred_check_branch
      %179 = sbr.rel (0) target = $region41
    $region40: #{tpu_custom_call.1} parent=1 // pred_region
      %180 = dma.done [#allocation4], 64
    $region41: #{tpu_custom_call.1} parent=1 // pred_fallthru
      _
    // Predicated region
    $region42: #{tpu_custom_call.1} parent=1 // pred_check
      _
    $region43: #{tpu_custom_call.1} parent=1 // pred_check_branch
      %182 = sbr.rel (0) target = $region45
    $region44: #{tpu_custom_call.1} parent=1 // pred_region
      %183 = dma.done [#allocation10], 64
    $region45: #{tpu_custom_call.1} parent=1 // pred_fallthru
      _
    // Predicated region
    $region46: #{tpu_custom_call.1} parent=1 // pred_check
      _
    $region47: #{tpu_custom_call.1} parent=1 // pred_check_branch
      %185 = sbr.rel (0) target = $region49
    $region48: #{tpu_custom_call.1} parent=1 // pred_region
      %186 = dma.done [#allocation10], 64
    $region49: #{tpu_custom_call.1} parent=1 // pred_fallthru
      _
    %187 = vsyncpa [#allocation3], 1
    %188 = vsyncpa [#allocation6], 1
    %189 = vsyncpa [#allocation4], 1
    %190 = vsyncpa [#allocation10], 1

</llo_original>
